<compile_context>
chip_gen: v7x
topology: tpu7x:2x2x1
jax: 0.10.0
libtpu: 0.0.40
codegen_flags: <defaults>
</compile_context>

<pallas_src>
import functools

import jax
import jax.numpy as jnp
from jax.experimental import pallas as pl
from jax.experimental.pallas import tpu as pltpu


def _voc_edge_kernel(x_ref, w_ref, b_ref, o_ref):
    # x_ref: [tile_r, Kin]   (Kin  = R*D)    packed edge features, R edges/row
    # w_ref: [Kin,    Wout]  (Wout = R*EMB)  block-diagonal, norm-folded weight
    # b_ref: [1,      Wout]                  norm-folded bias (kept f32)
    # o_ref: [tile_r, Wout]                  lane-dense output, R edges/row
    y = jnp.dot(x_ref[...], w_ref[...], preferred_element_type=jnp.float32)
    o_ref[...] = (y + b_ref[...]).astype(o_ref.dtype)


def fold_voc_edge_params(weight, bias, mean2, std2):
    """Fold (x - mean)/std on the first two features into the Linear params.

    Call ONCE per parameter set (hoisted out of the per-batch path).
    Returns (w_eff [D, EMB] f32, b_eff [EMB] f32) such that
        concat((x[:, :2]-mean)/std, x[:, 2:]) @ W + b == x @ w_eff + b_eff.
    """
    D = weight.shape[0]
    mean_full = jnp.zeros((D,), jnp.float32).at[:2].set(mean2.astype(jnp.float32))
    inv_std_full = jnp.ones((D,), jnp.float32).at[:2].set(
        1.0 / std2.astype(jnp.float32))
    w_eff = weight.astype(jnp.float32) * inv_std_full[:, None]      # [D, EMB]
    b_eff = bias.astype(jnp.float32) - mean_full @ w_eff            # [EMB]
    return w_eff, b_eff


def _round_up(x, m):
    return (x + m - 1) // m * m


@functools.partial(
    jax.jit, static_argnames=("tile_e", "pack_lanes", "io_dtype", "out_dtype"))
def voc_edge_apply(edge_attr, w_eff, b_eff, *, tile_e=8192, pack_lanes=128,
                   io_dtype=jnp.float32, out_dtype=jnp.float32):
    """edge_attr: [E, D]; (w_eff, b_eff) from fold_voc_edge_params."""
    E, D = edge_attr.shape
    EMB = w_eff.shape[1]

    # ---- packing factor R (edges per packed row) ----------------------------
    # Lane-dense output: pack R = pack_lanes // EMB edges per row so the output
    # block's last dim is a full multiple of 128 lanes (unmasked stores).
    if EMB % 128 == 0:
        R = 1                                   # already lane-dense
    elif pack_lanes % EMB == 0 and E % (pack_lanes // EMB) == 0:
        R = pack_lanes // EMB                   # e.g. EMB=32 -> R=4
    else:
        # Ragged E (or awkward EMB): plain layout with masked partial stores.
        # Still cheaper than re-introducing pad + slice HBM passes.
        R = 1

    rows = E // R
    k_in = R * D
    w_out = R * EMB

    # ---- operands (reshapes are free bitcasts; NO pad, NO trailing slice) ---
    x2d = edge_attr if R == 1 else edge_attr.reshape(rows, k_in)
    x2d = x2d.astype(io_dtype)
    if R == 1:
        w2d = w_eff
    else:
        w2d = jnp.zeros((k_in, w_out), jnp.float32)
        for r in range(R):  # tiny block-diagonal build; negligible per call
            w2d = w2d.at[r * D:(r + 1) * D, r * EMB:(r + 1) * EMB].set(w_eff)
    w2d = w2d.astype(io_dtype)
    b2d = (b_eff if R == 1 else jnp.tile(b_eff, R)).reshape(1, w_out)
    b2d = b2d.astype(jnp.float32)               # bias add stays f32 in-kernel

    # ---- tile choice ---------------------------------------------------------
    # Big tiles amortize the ~0.35 us per-step pipeline overhead; clamp to the
    # problem size so tiny inputs don't allocate oversized VMEM blocks.
    tile_r = max(8, (tile_e // R) // 8 * 8)
    tile_r = min(tile_r, _round_up(rows, 8))
    grid = (pl.cdiv(rows, tile_r),)             # partial last block is masked

    io_bytes = jnp.dtype(io_dtype).itemsize
    out_bytes = jnp.dtype(out_dtype).itemsize
    cost = pl.CostEstimate(
        flops=2 * E * D * EMB,                  # true FLOPs, not R-inflated
        transcendentals=0,
        bytes_accessed=int(E * D * io_bytes + E * EMB * out_bytes
                           + k_in * w_out * io_bytes + w_out * 4),
    )

    out2d = pl.pallas_call(
        _voc_edge_kernel,
        out_shape=jax.ShapeDtypeStruct((rows, w_out), out_dtype),
        grid_spec=pltpu.PrefetchScalarGridSpec(
            num_scalar_prefetch=0,
            grid=grid,
            in_specs=[
                pl.BlockSpec((tile_r, k_in), lambda i: (i, 0)),
                # Grid-invariant operands: constant block index -> DMA'd once.
                pl.BlockSpec((k_in, w_out), lambda i: (0, 0)),
                pl.BlockSpec((1, w_out), lambda i: (0, 0)),
            ],
            out_specs=pl.BlockSpec((tile_r, w_out), lambda i: (i, 0)),
        ),
        compiler_params=pltpu.CompilerParams(
            dimension_semantics=("parallel",),
            vmem_limit_bytes=40 * 1024 * 1024,  # headroom for v5e's 16 MiB default
        ),
        cost_estimate=cost,
    )(x2d, w2d, b2d)

    # Free reshape back to per-edge layout (no slice needed).
    return out2d if R == 1 else out2d.reshape(E, EMB)


def voc_edge_encoder(edge_attr, mean2, std2, weight, bias, **kwargs):
    """One-shot convenience wrapper.  In a loop, prefer calling
    fold_voc_edge_params once and voc_edge_apply per batch."""
    w_eff, b_eff = fold_voc_edge_params(weight, bias, mean2, std2)
    return voc_edge_apply(edge_attr, w_eff, b_eff, **kwargs)


def reference(edge_attr, mean2, std2, weight, bias):
    x = (edge_attr[:, :2] - mean2[None, :]) / std2[None, :]
    cat = jnp.concatenate([x, edge_attr[:, 2:]], axis=1)
    return cat @ weight + bias[None, :]


if __name__ == "__main__":
    # Config: cfg.dataset.name == 'edge_wt_region_boundary' (VOC_edge_input_dim=2)
    # and RWSE kernel with last step K=8  ->  Linear(in=2+8=10, out=emb_dim).
    D, EMB = 10, 32

    key = jax.random.PRNGKey(0)
    k_x, k_x2, k_w, k_b = jax.random.split(key, 4)

    weight = jax.random.normal(k_w, (D, EMB), jnp.float32) * 0.1
    bias = jax.random.normal(k_b, (EMB,), jnp.float32) * 0.1

    # Registered buffers from the module.
    mean2 = jnp.array([0.07640745, 33.73478], jnp.float32)
    std2 = jnp.array([0.0868775, 20.945076], jnp.float32)

    # Fold normalization into the Linear params ONCE (hoisted out of the
    # per-batch path).
    w_eff, b_eff = fold_voc_edge_params(weight, bias, mean2, std2)

    # --- case 1: E % 4 == 0 -> lane-dense packed path, single big tile -------
    E1 = 100
    ea1 = jax.random.normal(k_x, (E1, D), jnp.float32)
    out1 = jax.block_until_ready(voc_edge_apply(ea1, w_eff, b_eff))
    ref1 = reference(ea1, mean2, std2, weight, bias)
    assert out1.shape == (E1, EMB)
    assert jnp.allclose(out1, ref1, atol=1e-4, rtol=1e-4), "packed path mismatch"

    # --- case 2: small tile override -> multi-step grid + partial last block -
    out2 = jax.block_until_ready(voc_edge_apply(ea1, w_eff, b_eff, tile_e=64))
    assert jnp.allclose(out2, ref1, atol=1e-4, rtol=1e-4), "multi-step mismatch"

    # --- case 3: E % 4 != 0 -> fallback layout (still no pad / no slice) -----
    E3 = 101
    ea3 = jax.random.normal(k_x2, (E3, D), jnp.float32)
    out3 = jax.block_until_ready(voc_edge_apply(ea3, w_eff, b_eff))
    ref3 = reference(ea3, mean2, std2, weight, bias)
    assert out3.shape == (E3, EMB)
    assert jnp.allclose(out3, ref3, atol=1e-4, rtol=1e-4), "fallback path mismatch"

    # --- case 4: bf16 I/O (halves HBM traffic; MXU accumulation stays f32) ---
    out4 = jax.block_until_ready(
        voc_edge_apply(ea1, w_eff, b_eff,
                       io_dtype=jnp.bfloat16, out_dtype=jnp.bfloat16))
    assert out4.dtype == jnp.bfloat16
    assert jnp.allclose(out4.astype(jnp.float32), ref1, atol=1e-1, rtol=1e-1), \
        "bf16 path mismatch"

    # Convenience one-shot wrapper (module-equivalent signature) still works.
    out5 = jax.block_until_ready(voc_edge_encoder(ea1, mean2, std2, weight, bias))
    assert jnp.allclose(out5, ref1, atol=1e-4, rtol=1e-4)

    print("KERNEL_OK")
</pallas_src>

<mosaic_0001>
module attributes {stable_mosaic.version = 11 : i64} {
  func.func @_voc_edge_kernel(%arg0: i32, %arg1: memref<32x40xf32, #tpu.memory_space<vmem>>, %arg2: memref<40x128xf32, #tpu.memory_space<vmem>>, %arg3: memref<1x128xf32, #tpu.memory_space<vmem>>, %arg4: memref<32x128xf32, #tpu.memory_space<vmem>>) attributes {dimension_semantics = [#tpu.dimension_semantics<parallel>], iteration_bounds = array<i64: 1>, scalar_prefetch = 0 : i64, scratch_operands = 0 : i64, tpu.core_type = #tpu.core_type<tc>, window_params = [{transform_indices = @transform_0, window_bounds = array<i64: 32, 40>}, {pipeline_mode = #tpu.pipeline_mode<synchronous>, transform_indices = @transform_1, window_bounds = array<i64: 40, 128>}, {pipeline_mode = #tpu.pipeline_mode<synchronous>, transform_indices = @transform_2, window_bounds = array<i64: 1, 128>}, {transform_indices = @transform_3, window_bounds = array<i64: 32, 128>}]} {
    %c0 = arith.constant 0 : index
    %c0_0 = arith.constant 0 : index
    %0 = vector.load %arg1[%c0, %c0_0] : memref<32x40xf32, #tpu.memory_space<vmem>>, vector<32x40xf32>
    %c0_1 = arith.constant 0 : index
    %c0_2 = arith.constant 0 : index
    %1 = vector.load %arg2[%c0_1, %c0_2] : memref<40x128xf32, #tpu.memory_space<vmem>>, vector<40x128xf32>
    %cst = arith.constant dense<0.000000e+00> : vector<32x128xf32>
    %2 = tpu.matmul %0, %1, %cst {dimension_numbers = #tpu.dot_dimension_numbers<[1], [0], [0], [1], [0, 0, 1, 1], [], []>} : vector<32x40xf32>, vector<40x128xf32>, vector<32x128xf32> -> vector<32x128xf32>
    %c0_3 = arith.constant 0 : index
    %c0_4 = arith.constant 0 : index
    %3 = vector.load %arg3[%c0_3, %c0_4] : memref<1x128xf32, #tpu.memory_space<vmem>>, vector<1x128xf32>
    %4 = vector.broadcast %3 : vector<1x128xf32> to vector<32x128xf32>
    %5 = arith.addf %2, %4 : vector<32x128xf32>
    %c0_5 = arith.constant 0 : index
    %c0_6 = arith.constant 0 : index
    %6 = vector.load %arg4[%c0_5, %c0_6] : memref<32x128xf32, #tpu.memory_space<vmem>>, vector<32x128xf32>
    tpu.vector_store %arg4[%c0_5, %c0_6], %5 {strides = array<i32>} : memref<32x128xf32, #tpu.memory_space<vmem>>, vector<32x128xf32>,
    return
  }
  func.func @transform_0(%arg0: i32) -> (i32, i32) {
    %c0_i32 = arith.constant 0 : i32
    %c0_i32_0 = arith.constant 0 : i32
    return %arg0, %c0_i32 : i32, i32
  }
  func.func @transform_1(%arg0: i32) -> (i32, i32) {
    %c0_i32 = arith.constant 0 : i32
    %c0_i32_0 = arith.constant 0 : i32
    %c0_i32_1 = arith.constant 0 : i32
    return %c0_i32, %c0_i32_0 : i32, i32
  }
  func.func @transform_2(%arg0: i32) -> (i32, i32) {
    %c0_i32 = arith.constant 0 : i32
    %c0_i32_0 = arith.constant 0 : i32
    %c0_i32_1 = arith.constant 0 : i32
    return %c0_i32, %c0_i32_0 : i32, i32
  }
  func.func @transform_3(%arg0: i32) -> (i32, i32) {
    %c0_i32 = arith.constant 0 : i32
    %c0_i32_0 = arith.constant 0 : i32
    return %arg0, %c0_i32 : i32, i32
  }
}

</mosaic_0001>

<llo_original>
// kernel: tile.8
$region0: #{tile.8}
  #allocation0 [shape = 's32[1]{0}', space=sflag, size = 0x4, scoped, tag = 'scoped memory for tile.8']
  %s0 = inlined_call_operand.vmem [shape: f32[32], index: 0, kind: input, shape index: {}]
  %s1 = inlined_call_operand.vmem [shape: f32[4,32], index: 1, kind: output, shape index: {}]
  // Predicated region
  $region2: #{tile.8} parent=0 // pred_check
    _
  $region3: #{tile.8} parent=0 // pred_check_branch
    %3 = sbr.rel (0) target = $region5
  $region4: #{tile.8} parent=0 // pred_region
    _
  $region5: #{tile.8} parent=0 // pred_fallthru
    _
  %v4 = vld [vmem:[%s0] ss:$0 sm:$0xff]
  %5 = vst [vmem:[%s1] sm:$0xf] %v4

// kernel: tile.9
$region0: #{tile.9}
  %s0 = inlined_call_operand.vmem [shape: f32[4,32], index: 0, kind: input, shape index: {}]
  %s1 = inlined_call_operand.vmem [shape: f32[1,128], index: 1, kind: output, shape index: {}]
  $region1: #{tile.9} parent=0
    #allocation0 [shape = 'u8[4096]{0}', space=vmem, size = 0x1000, scoped, tag = 'scoped mem for output reshape']
    #allocation1 [shape = 'u8[4096]{0}', space=vmem, size = 0x1000, scoped, tag = 'scoped mem for input reshape']
    %s3 = sshllo.u32 0, 4
    %v4 = vld [vmem:[%s0] sm:%s3]
    %5 = vst [vmem:[#allocation1] sm:%s3] %v4
    %v6 = vld [vmem:[#allocation1] sm:$0x1]
    %vm7 = vcmask 261120
    %8 = vst.msk [vmem:[#allocation0] sm:$0x1] %vm7, %v6
    %s9 = scalar_lea.vmem [#allocation1], 3
    %v10 = vld [vmem:[%s9] sm:$0x1]
    %11 = vrot.lane.b32.xlu0 %v10, 96
    %v12 = vpop.permute.xlu0 %11
    %vm13 = vcmask 1048320
    %14 = vst.msk [vmem:[#allocation0] sm:$0x1] %vm13, %v12
    %s15 = scalar_lea.vmem [#allocation1], 2
    %v16 = vld [vmem:[%s15] sm:$0x1]
    %17 = vrot.lane.b32.xlu0 %v16, 64
    %v18 = vpop.permute.xlu0 %17
    %vm19 = vcmask 785920
    %20 = vst.msk [vmem:[#allocation0] sm:$0x1] %vm19, %v18
    %s21 = scalar_lea.vmem [#allocation1], 1
    %v22 = vld [vmem:[%s21] sm:$0x1]
    %23 = vrot.lane.b32.xlu0 %v22, 32
    %v24 = vpop.permute.xlu0 %23
    %vm25 = vcmask 523520
    %26 = vst.msk [vmem:[#allocation0] sm:$0x1] %vm25, %v24
    %s28 = sshllo.u32 0, 1
    %v30 = vld [vmem:[#allocation0] sm:%s28]
    %s31 = sshllo.u32 0, 1
    %32 = vst [vmem:[%s1] sm:%s31] %v30

// kernel: voc_edge_apply.1
$region0: #{voc_edge_apply.1}
  #allocation0 [shape = 'u32[]', space=smem, size = 0x4, offset = 0x4, fixed_abs, tag = 'smem constant byte address 0x4 - core index']
  #allocation1 [shape = 'u32[144,128]{1,0:T(1,128)}', space=vmem, size = 0x12000, scoped, tag = 'internal scratch']
  %s0 = inlined_call_operand.vmem [shape: f32[25,40], index: 0, kind: input, shape index: {}]
  %s1 = inlined_call_operand.vmem [shape: f32[40,128], index: 1, kind: input, shape index: {}]
  %s2 = inlined_call_operand.vmem [shape: f32[1,128], index: 2, kind: input, shape index: {}]
  %s3 = inlined_call_operand.vmem [shape: f32[25,128], index: 3, kind: output, shape index: {}]
  %s4 = sld [smem:[#allocation0]]
  $region22: #{voc_edge_apply.1} parent=0
    _
  %s6 = ssub.s32 1, %s4
  %s7 = scalar_select 0, %s6, %s4
  // Predicated region
  $region2: #{voc_edge_apply.1} parent=0 // pred_check
    _
  $region3: #{voc_edge_apply.1} parent=0 // pred_check_branch
    %9 = sbr.rel (0) target = $region5
  $region4: #{voc_edge_apply.1} parent=0 // pred_region
    _
  $region5: #{voc_edge_apply.1} parent=0 // pred_fallthru
    _
  // Predicated region
  $region6: #{voc_edge_apply.1} parent=0 // pred_check
    _
  $region7: #{voc_edge_apply.1} parent=0 // pred_check_branch
    %11 = sbr.rel (0) target = $region9
  $region8: #{voc_edge_apply.1} parent=0 // pred_region
    _
  $region9: #{voc_edge_apply.1} parent=0 // pred_fallthru
    _
  // Predicated region
  $region10: #{voc_edge_apply.1} parent=0 // pred_check
    _
  $region11: #{voc_edge_apply.1} parent=0 // pred_check_branch
    %13 = sbr.rel (0) target = $region13
  $region12: #{voc_edge_apply.1} parent=0 // pred_region
    _
  $region13: #{voc_edge_apply.1} parent=0 // pred_fallthru
    _
  %v14 = vld [vmem:[%s0] sm:$0xff]
  %v15 = vld [vmem:[%s0 + $0x8] sm:$0xff]
  %v16 = vld [vmem:[%s0 + $0x10] sm:$0xff]
  %v17 = vld [vmem:[%s0 + $0x18] sm:$0xff]
  %v18 = vld [vmem:[%s1] sm:$0xff]
  %v19 = vld [vmem:[%s1 + $0x8] sm:$0xff]
  %v20 = vld [vmem:[%s1 + $0x10] sm:$0xff]
  %v21 = vld [vmem:[%s1 + $0x18] sm:$0xff]
  %v22 = vld [vmem:[%s1 + $0x20] sm:$0xff]
  %v23 = vld [vmem:[%s2] sm:$0x1]
  %v25 = vlaneseq
  %v26 = vshrl.u32 %v25, 7
  %v27 = vsub.s32 0, %v26
  %v28 = vrot.slane %v23, %v27
  %vm30 = vcmask 326656
  %v32 = vsel %vm30, %v14, 0
  %v35 = vsel %vm30, %v15, 0
  %v38 = vsel %vm30, %v16, 0
  %v41 = vsel %vm30, %v17, 0
  %43 = vmatprep.subr.mxu0 0.0
  %44 = vmatpush1.msra.mxu0 %v18
  %45 = vmatprep.subr.mxu0 0.0
  %46 = vmatpush1.msra.mxu0 %v19
  %47 = vmatprep.subr.mxu0 0.0
  %48 = vmatpush1.msra.mxu0 %v20
  %49 = vmatprep.subr.mxu0 0.0
  %50 = vmatpush1.msra.mxu0 %v21
  %51 = vmatprep.subr.mxu0 0.0
  %52 = vmatpush1.msra.mxu0 %v22
  %53 = vmatprep.subr.mxu0 0.0
  %54 = vmatpush1.msra.mxu0 0.0
  %55 = vmatprep.subr.mxu0 0.0
  %56 = vmatpush1.msra.mxu0 0.0
  %57 = vmatprep.subr.mxu0 0.0
  %58 = vmatpush1.msra.mxu0 0.0
  %59 = vmatprep.subr.mxu0 0.0
  %60 = vmatpush1.msra.mxu0 0.0
  %61 = vmatprep.subr.mxu0 0.0
  %62 = vmatpush1.msra.mxu0 0.0
  %63 = vmatprep.subr.mxu0 0.0
  %64 = vmatpush1.msra.mxu0 0.0
  %65 = vmatprep.subr.mxu0 0.0
  %66 = vmatpush1.msra.mxu0 0.0
  %67 = vmatprep.subr.mxu0 0.0
  %68 = vmatpush1.msra.mxu0 0.0
  %69 = vmatprep.subr.mxu0 0.0
  %70 = vmatpush1.msra.mxu0 0.0
  %71 = vmatprep.subr.mxu0 0.0
  %72 = vmatpush1.msra.mxu0 0.0
  %73 = vmatprep.subr.mxu0 0.0
  %74 = vmatpush1.msra.mxu0 0.0
  %75 = vmatprep.subr.mxu0 0.0
  %76 = vmatpush1.msra.mxu0 0.0
  %77 = vmatprep.subr.mxu0 0.0
  %78 = vmatpush1.msra.mxu0 0.0
  %79 = vmatprep.subr.mxu0 0.0
  %80 = vmatpush1.msra.mxu0 0.0
  %81 = vmatprep.subr.mxu0 0.0
  %82 = vmatpush1.msra.mxu0 0.0
  %83 = vmatprep.subr.mxu0 0.0
  %84 = vmatpush1.msra.mxu0 0.0
  %85 = vmatprep.subr.mxu0 0.0
  %86 = vmatpush1.msra.mxu0 0.0
  %87 = vmatprep.subr.mxu0 0.0
  %88 = vmatpush1.msra.mxu0 0.0
  %89 = vmatprep.subr.mxu0 0.0
  %90 = vmatpush1.msra.mxu0 0.0
  %91 = vmatprep.subr.mxu0 0.0
  %92 = vmatpush1.msra.mxu0 0.0
  %93 = vmatprep.subr.mxu0 0.0
  %94 = vmatpush1.msra.mxu0 0.0
  %95 = vmatprep.subr.mxu0 0.0
  %96 = vmatpush1.msra.mxu0 0.0
  %97 = vmatprep.subr.mxu0 0.0
  %98 = vmatpush1.msra.mxu0 0.0
  %99 = vmatprep.subr.mxu0 0.0
  %100 = vmatpush1.msra.mxu0 0.0
  %101 = vmatprep.subr.mxu0 0.0
  %102 = vmatpush1.msra.mxu0 0.0
  %103 = vmatprep.subr.mxu0 0.0
  %104 = vmatpush1.msra.mxu0 0.0
  %105 = vmatprep.subr.mxu0 0.0
  %106 = vmatpush1.msra.mxu0 0.0
  %107 = vmatprep.mubr.f32.mxu0 0.0
  %108 = vmatmul.mubr.f32.gmra.mrb[0].mxu0 %v32
  %v109 = vpop.f32.mrb[0].mxu0
  %v110 = vadd.f32 %v28, %v109
  %v111 = vpop.f32.mrb[0].mxu0
  %112 = vmatprep.mubr.f32.mxu0 0.0
  %113 = vmatmul.mubr.f32.gmra.mrb[0].mxu0 %v35
  %v114 = vpop.f32.mrb[0].mxu0
  %v115 = vadd.f32 %v28, %v114
  %v116 = vpop.f32.mrb[0].mxu0
  %117 = vmatprep.mubr.f32.mxu0 0.0
  %118 = vmatmul.mubr.f32.gmra.mrb[0].mxu0 %v38
  %v119 = vpop.f32.mrb[0].mxu0
  %v120 = vadd.f32 %v28, %v119
  %v121 = vpop.f32.mrb[0].mxu0
  %122 = vmatprep.mubr.f32.mxu0 0.0
  %123 = vmatmul.mubr.f32.gmra.mrb[0].mxu0 %v41
  %v124 = vpop.f32.mrb[0].mxu0
  %v125 = vadd.f32 %v28, %v124
  %v126 = vpop.f32.mrb[0].mxu0
  %127 = vdwg.mxu0
  %128 = vst [vmem:[%s3] sm:$0xff] %v110
  %129 = vst [vmem:[%s3 + $0x8] sm:$0xff] %v115
  %130 = vst [vmem:[%s3 + $0x10] sm:$0xff] %v120
  %131 = vst [vmem:[%s3 + $0x18] sm:$0xff] %v125
  // Predicated region
  $region14: #{voc_edge_apply.1} parent=0 // pred_check
    _
  $region15: #{voc_edge_apply.1} parent=0 // pred_check_branch
    %133 = sbr.rel (0) target = $region17
  $region16: #{voc_edge_apply.1} parent=0 // pred_region
    _
  $region17: #{voc_edge_apply.1} parent=0 // pred_fallthru
    _
  // Predicated region
  $region18: #{voc_edge_apply.1} parent=0 // pred_check
    _
  $region19: #{voc_edge_apply.1} parent=0 // pred_check_branch
    %135 = sbr.rel (0) target = $region21
  $region20: #{voc_edge_apply.1} parent=0 // pred_region
    _
  $region21: #{voc_edge_apply.1} parent=0 // pred_fallthru
    _

</llo_original>
